<compile_context>
chip_gen: v6e
topology: v6e:2x2x1
jax: 0.10.0
libtpu: 0.0.40
codegen_flags: <defaults>
</compile_context>

<pallas_src>
import jax
import jax.numpy as jnp
from jax.experimental import pallas as pl
from jax.experimental.pallas import tpu as pltpu


def _ceil_div(a, b):
    return -(-a // b)


def _num_tensorcores():
    """2 on multi-TensorCore chips (v7x); 1 on v5e/v6e. A wrong guess only costs perf."""
    try:
        kind = jax.devices()[0].device_kind.lower()
    except Exception:
        return 1
    return 2 if ("v7" in kind or "tpu7" in kind) else 1


def _vmem_limit_bytes():
    """Per-core VMEM budget for this kernel (generation aware, with headroom)."""
    try:
        cap = int(pltpu.get_tpu_info().vmem_capacity_bytes)
    except Exception:
        cap = 64 * 1024 * 1024              # conservative: v7x per-TensorCore VMEM
    if cap <= 0:
        cap = 64 * 1024 * 1024
    # 128-MiB parts (v5e/v6e) -> 100 MiB; 64-MiB parts (v7x) -> 48 MiB.
    return max(32 * 1024 * 1024, min(cap - 16 * 1024 * 1024, 100 * 1024 * 1024))


def _make_kernel(B, H, W, HA, steps, nc_valid, ragged):
    """Build the kernel closure. HA divides H; accumulators are (HA, W)."""
    R = H // HA

    def kernel(p_ref, t_ref, o_sq_ref, o_gx_ref, o_gy_ref,
               acc_sq, acc_gx, acc_gy, acc_gxw):
        step = pl.program_id(1)

        @pl.when(step == 0)
        def _init():
            acc_sq[...] = jnp.zeros_like(acc_sq)
            acc_gx[...] = jnp.zeros_like(acc_gx)
            acc_gy[...] = jnp.zeros_like(acc_gy)
            acc_gxw[...] = jnp.zeros_like(acc_gxw)

        def accumulate(d):
            # --- MSE partial sum, folded over (B, H//HA) with pure VPU adds.
            dm = d.reshape(B * R, HA, W)
            acc_sq[...] += jnp.sum(dm * dm, axis=0)
            # --- Gradient L1 partial sums via circular roll (XLU), UNMASKED.
            # roll(d, H-1, axis=1)[:, i, :] == d[:, (i+1) % H, :]; the wrap term
            # sits in row H-1 (gx) / column W-1 (gy) and is removed at finalize.
            agx = jnp.abs(pltpu.roll(d, H - 1, axis=1) - d)        # (B, H, W)
            acc_gx[...] += jnp.sum(agx.reshape(B * R, HA, W), axis=0)
            acc_gxw[...] += jnp.sum(agx[:, H - 1:H, :], axis=0)    # wrap row only
            agy = jnp.abs(pltpu.roll(d, W - 1, axis=2) - d)        # (B, H, W)
            acc_gy[...] += jnp.sum(agy.reshape(B * R, HA, W), axis=0)

        d = p_ref[...].astype(jnp.float32) - t_ref[...].astype(jnp.float32)

        if not ragged:
            accumulate(d)
        else:
            start = (pl.program_id(0) * steps + step) * B   # true global slice start
            is_full = start + B <= nc_valid

            @pl.when(is_full)
            def _full():
                accumulate(d)

            @pl.when(jnp.logical_not(is_full))
            def _tail():
                # Only the ragged (or duplicated out-of-range) blocks pay for the
                # mask; invalid slices contribute exactly zero.
                nvalid = nc_valid - start
                bmask = jax.lax.broadcasted_iota(jnp.int32, (B, H, W), 0) < nvalid
                accumulate(jnp.where(bmask, d, 0.0))

        @pl.when(step == pl.num_programs(1) - 1)
        def _finalize():
            o_sq_ref[...] = jnp.reshape(jnp.sum(acc_sq[...]), (1, 1, 1))
            o_gx_ref[...] = jnp.reshape(
                jnp.sum(acc_gx[...]) - jnp.sum(acc_gxw[...]), (1, 1, 1))
            gy = acc_gy[...]
            o_gy_ref[...] = jnp.reshape(
                jnp.sum(gy) - jnp.sum(gy[:, W - 1:W]), (1, 1, 1))

    return kernel


def multiple_loss(predict, target, weights=(0.5, 0.5), gradient_loss_weight=1.0):
    """Pallas implementation of MultipleLoss.forward (NCHW inputs)."""
    assert predict.shape == target.shape
    N, C, H, W = predict.shape
    assert H > 1 and W > 1, "gradients need H > 1 and W > 1"
    NC = N * C

    # No wrapper-side dtype cast and no padding concatenate: either would add a
    # full extra HBM read+write pass before a single-pass, memory-bound kernel.
    p = predict.reshape(NC, H, W)
    t = target.reshape(NC, H, W)
    itemsize = jnp.dtype(predict.dtype).itemsize

    ncores = _num_tensorcores()
    if NC < ncores:
        ncores = 1
    per_core = _ceil_div(NC, ncores)

    HA = 8 if H % 8 == 0 else H                 # accumulator sublane height
    scratch_bytes = (3 * HA * W + 8 * W) * 4    # 3 folded accs + padded wrap acc

    vmem_limit = _vmem_limit_bytes()
    sizing_budget = vmem_limit - scratch_bytes - 2 * 1024 * 1024
    # Per B-slice: 2 inputs x 2 pipeline buffers (native dtype) + ~5 f32-block
    # temporaries (d, |gx|, |gy|, ...) of headroom for the compiler.
    per_slice = 4 * H * W * itemsize + 5 * H * W * 4
    B = max(1, min(sizing_budget // per_slice, per_core))

    steps = _ceil_div(per_core, B)
    ragged = (ncores * steps * B != NC)
    last_block = (NC - 1) // B

    def in_index_map(c, i):
        blk = c * steps + i
        if ragged:
            blk = jnp.minimum(blk, last_block)  # keep every DMA fully in bounds
        return (blk, 0, 0)

    in_spec = pl.BlockSpec((B, H, W), in_index_map)
    out_spec = pl.BlockSpec((1, 1, 1), lambda c, i: (c, 0, 0))
    out_shape = [jax.ShapeDtypeStruct((ncores, 1, 1), jnp.float32)] * 3

    cost = pl.CostEstimate(
        flops=11 * NC * H * W,
        transcendentals=0,
        bytes_accessed=2 * NC * H * W * itemsize,
    )

    kernel = _make_kernel(B, H, W, HA, steps, NC, ragged)

    s_sq, s_gx, s_gy = pl.pallas_call(
        kernel,
        out_shape=out_shape,
        grid_spec=pltpu.PrefetchScalarGridSpec(
            num_scalar_prefetch=0,
            grid=(ncores, steps),
            in_specs=[in_spec, in_spec],
            out_specs=[out_spec, out_spec, out_spec],
            scratch_shapes=[pltpu.VMEM((HA, W), jnp.float32),
                            pltpu.VMEM((HA, W), jnp.float32),
                            pltpu.VMEM((HA, W), jnp.float32),
                            pltpu.VMEM((1, W), jnp.float32)],
        ),
        compiler_params=pltpu.CompilerParams(
            dimension_semantics=("parallel", "arbitrary"),
            vmem_limit_bytes=vmem_limit,
        ),
        cost_estimate=cost,
    )(p, t)

    sum_sq = jnp.sum(s_sq)      # sum the per-core partials
    sum_gx = jnp.sum(s_gx)
    sum_gy = jnp.sum(s_gy)

    mse = sum_sq / float(NC * H * W)
    grad_l1 = (sum_gx / float(NC * (H - 1) * W)
               + sum_gy / float(NC * H * (W - 1)))
    return weights[0] * mse + weights[1] * (gradient_loss_weight * grad_l1)


def _multiple_loss_ref(predict, target, weights=(0.5, 0.5)):
    """Pure-JAX reference mirroring the PyTorch forward."""
    def grads(img):
        return img[..., 1:, :] - img[..., :-1, :], img[..., 1:] - img[..., :-1]

    mse = jnp.mean((predict - target) ** 2)
    pgx, pgy = grads(predict)
    tgx, tgy = grads(target)
    gl = jnp.mean(jnp.abs(pgx - tgx)) + jnp.mean(jnp.abs(pgy - tgy))
    return weights[0] * mse + weights[1] * gl


if __name__ == "__main__":
    key = jax.random.PRNGKey(0)
    k1, k2 = jax.random.split(key)
    N, C, H, W = 2, 4, 16, 16
    predict = jax.random.uniform(k1, (N, C, H, W), dtype=jnp.float32)
    target = jax.random.uniform(k2, (N, C, H, W), dtype=jnp.float32)

    out = multiple_loss(predict, target)
    out = jax.block_until_ready(out)

    ref = _multiple_loss_ref(predict, target)
    ref = jax.block_until_ready(ref)

    rel_err = abs(float(out) - float(ref)) / (abs(float(ref)) + 1e-30)
    assert rel_err < 1e-4, f"mismatch: pallas={float(out)} ref={float(ref)} rel={rel_err}"

    print("KERNEL_OK")
</pallas_src>

<mosaic_0001>
module attributes {stable_mosaic.version = 11 : i64} {
  func.func @kernel(%arg0: i32, %arg1: i32, %arg2: memref<8x16x16xf32, #tpu.memory_space<vmem>>, %arg3: memref<8x16x16xf32, #tpu.memory_space<vmem>>, %arg4: memref<1x1x1xf32, #tpu.memory_space<vmem>>, %arg5: memref<1x1x1xf32, #tpu.memory_space<vmem>>, %arg6: memref<1x1x1xf32, #tpu.memory_space<vmem>>, %arg7: memref<8x16xf32, #tpu.memory_space<vmem>>, %arg8: memref<8x16xf32, #tpu.memory_space<vmem>>, %arg9: memref<8x16xf32, #tpu.memory_space<vmem>>, %arg10: memref<1x16xf32, #tpu.memory_space<vmem>>) attributes {dimension_semantics = [#tpu.dimension_semantics<parallel>, #tpu.dimension_semantics<arbitrary>], iteration_bounds = array<i64: 1, 1>, scalar_prefetch = 0 : i64, scratch_operands = 4 : i64, tpu.core_type = #tpu.core_type<tc>, window_params = [{transform_indices = @transform_0, window_bounds = array<i64: 8, 16, 16>}, {transform_indices = @transform_1, window_bounds = array<i64: 8, 16, 16>}, {transform_indices = @transform_2, window_bounds = array<i64: 1, 1, 1>}, {transform_indices = @transform_3, window_bounds = array<i64: 1, 1, 1>}, {transform_indices = @transform_4, window_bounds = array<i64: 1, 1, 1>}]} {
    %c0_i32 = arith.constant 0 : i32
    %0 = arith.cmpi eq, %arg1, %c0_i32 : i32
    %1 = arith.extui %0 : i1 to i32
    %c0_i32_0 = arith.constant 0 : i32
    %2 = arith.cmpi ne, %1, %c0_i32_0 : i32
    scf.if %2 {
      %cst_28 = arith.constant 0.000000e+00 : f32
      %36 = vector.broadcast %cst_28 : f32 to vector<8x16xf32>
      %c0_29 = arith.constant 0 : index
      %c0_30 = arith.constant 0 : index
      %37 = vector.load %arg7[%c0_29, %c0_30] : memref<8x16xf32, #tpu.memory_space<vmem>>, vector<8x16xf32>
      tpu.vector_store %arg7[%c0_29, %c0_30], %36 {strides = array<i32>} : memref<8x16xf32, #tpu.memory_space<vmem>>, vector<8x16xf32>,
      %cst_31 = arith.constant 0.000000e+00 : f32
      %38 = vector.broadcast %cst_31 : f32 to vector<8x16xf32>
      %c0_32 = arith.constant 0 : index
      %c0_33 = arith.constant 0 : index
      %39 = vector.load %arg8[%c0_32, %c0_33] : memref<8x16xf32, #tpu.memory_space<vmem>>, vector<8x16xf32>
      tpu.vector_store %arg8[%c0_32, %c0_33], %38 {strides = array<i32>} : memref<8x16xf32, #tpu.memory_space<vmem>>, vector<8x16xf32>,
      %cst_34 = arith.constant 0.000000e+00 : f32
      %40 = vector.broadcast %cst_34 : f32 to vector<8x16xf32>
      %c0_35 = arith.constant 0 : index
      %c0_36 = arith.constant 0 : index
      %41 = vector.load %arg9[%c0_35, %c0_36] : memref<8x16xf32, #tpu.memory_space<vmem>>, vector<8x16xf32>
      tpu.vector_store %arg9[%c0_35, %c0_36], %40 {strides = array<i32>} : memref<8x16xf32, #tpu.memory_space<vmem>>, vector<8x16xf32>,
      %cst_37 = arith.constant 0.000000e+00 : f32
      %42 = vector.broadcast %cst_37 : f32 to vector<1x16xf32>
      %c0_38 = arith.constant 0 : index
      %c0_39 = arith.constant 0 : index
      %43 = vector.load %arg10[%c0_38, %c0_39] : memref<1x16xf32, #tpu.memory_space<vmem>>, vector<1x16xf32>
      tpu.vector_store %arg10[%c0_38, %c0_39], %42 {strides = array<i32>} : memref<1x16xf32, #tpu.memory_space<vmem>>, vector<1x16xf32>,
    } else {
    }
    %c0 = arith.constant 0 : index
    %c0_1 = arith.constant 0 : index
    %c0_2 = arith.constant 0 : index
    %3 = vector.load %arg2[%c0, %c0_1, %c0_2] : memref<8x16x16xf32, #tpu.memory_space<vmem>>, vector<8x16x16xf32>
    %c0_3 = arith.constant 0 : index
    %c0_4 = arith.constant 0 : index
    %c0_5 = arith.constant 0 : index
    %4 = vector.load %arg3[%c0_3, %c0_4, %c0_5] : memref<8x16x16xf32, #tpu.memory_space<vmem>>, vector<8x16x16xf32>
    %5 = arith.subf %3, %4 : vector<8x16x16xf32>
    %6 = vector.shape_cast %5 : vector<8x16x16xf32> to vector<16x8x16xf32>
    %c0_6 = arith.constant 0 : index
    %c0_7 = arith.constant 0 : index
    %7 = vector.load %arg7[%c0_6, %c0_7] : memref<8x16xf32, #tpu.memory_space<vmem>>, vector<8x16xf32>
    %8 = arith.mulf %6, %6 : vector<16x8x16xf32>
    %cst = arith.constant dense<0.000000e+00> : vector<8x16xf32>
    %9 = vector.multi_reduction <add>, %8, %cst [0] : vector<16x8x16xf32> to vector<8x16xf32>
    %10 = arith.addf %7, %9 : vector<8x16xf32>
    %c0_8 = arith.constant 0 : index
    %c0_9 = arith.constant 0 : index
    %11 = vector.load %arg7[%c0_8, %c0_9] : memref<8x16xf32, #tpu.memory_space<vmem>>, vector<8x16xf32>
    tpu.vector_store %arg7[%c0_8, %c0_9], %10 {strides = array<i32>} : memref<8x16xf32, #tpu.memory_space<vmem>>, vector<8x16xf32>,
    %c15_i32 = arith.constant 15 : i32
    %12 = tpu.dynamic_rotate %5 by %c15_i32 dim 1 : vector<8x16x16xf32>, i32 -> vector<8x16x16xf32>
    %13 = arith.subf %12, %5 : vector<8x16x16xf32>
    %14 = math.absf %13 : vector<8x16x16xf32>
    %c0_10 = arith.constant 0 : index
    %c0_11 = arith.constant 0 : index
    %15 = vector.load %arg8[%c0_10, %c0_11] : memref<8x16xf32, #tpu.memory_space<vmem>>, vector<8x16xf32>
    %16 = vector.shape_cast %14 : vector<8x16x16xf32> to vector<16x8x16xf32>
    %cst_12 = arith.constant dense<0.000000e+00> : vector<8x16xf32>
    %17 = vector.multi_reduction <add>, %16, %cst_12 [0] : vector<16x8x16xf32> to vector<8x16xf32>
    %18 = arith.addf %15, %17 : vector<8x16xf32>
    %c0_13 = arith.constant 0 : index
    %c0_14 = arith.constant 0 : index
    %19 = vector.load %arg8[%c0_13, %c0_14] : memref<8x16xf32, #tpu.memory_space<vmem>>, vector<8x16xf32>
    tpu.vector_store %arg8[%c0_13, %c0_14], %18 {strides = array<i32>} : memref<8x16xf32, #tpu.memory_space<vmem>>, vector<8x16xf32>,
    %c0_15 = arith.constant 0 : index
    %c0_16 = arith.constant 0 : index
    %20 = vector.load %arg10[%c0_15, %c0_16] : memref<1x16xf32, #tpu.memory_space<vmem>>, vector<1x16xf32>
    %21 = vector.extract_strided_slice %14 {offsets = [0, 15, 0], sizes = [8, 1, 16], strides = [1, 1, 1]} : vector<8x16x16xf32> to vector<8x1x16xf32>
    %cst_17 = arith.constant dense<0.000000e+00> : vector<1x16xf32>
    %22 = vector.multi_reduction <add>, %21, %cst_17 [0] : vector<8x1x16xf32> to vector<1x16xf32>
    %23 = arith.addf %20, %22 : vector<1x16xf32>
    %c0_18 = arith.constant 0 : index
    %c0_19 = arith.constant 0 : index
    %24 = vector.load %arg10[%c0_18, %c0_19] : memref<1x16xf32, #tpu.memory_space<vmem>>, vector<1x16xf32>
    tpu.vector_store %arg10[%c0_18, %c0_19], %23 {strides = array<i32>} : memref<1x16xf32, #tpu.memory_space<vmem>>, vector<1x16xf32>,
    %c15_i32_20 = arith.constant 15 : i32
    %25 = tpu.dynamic_rotate %5 by %c15_i32_20 dim 2 : vector<8x16x16xf32>, i32 -> vector<8x16x16xf32>
    %26 = arith.subf %25, %5 : vector<8x16x16xf32>
    %27 = math.absf %26 : vector<8x16x16xf32>
    %c0_21 = arith.constant 0 : index
    %c0_22 = arith.constant 0 : index
    %28 = vector.load %arg9[%c0_21, %c0_22] : memref<8x16xf32, #tpu.memory_space<vmem>>, vector<8x16xf32>
    %29 = vector.shape_cast %27 : vector<8x16x16xf32> to vector<16x8x16xf32>
    %cst_23 = arith.constant dense<0.000000e+00> : vector<8x16xf32>
    %30 = vector.multi_reduction <add>, %29, %cst_23 [0] : vector<16x8x16xf32> to vector<8x16xf32>
    %31 = arith.addf %28, %30 : vector<8x16xf32>
    %c0_24 = arith.constant 0 : index
    %c0_25 = arith.constant 0 : index
    %32 = vector.load %arg9[%c0_24, %c0_25] : memref<8x16xf32, #tpu.memory_space<vmem>>, vector<8x16xf32>
    tpu.vector_store %arg9[%c0_24, %c0_25], %31 {strides = array<i32>} : memref<8x16xf32, #tpu.memory_space<vmem>>, vector<8x16xf32>,
    %c0_i32_26 = arith.constant 0 : i32
    %33 = arith.cmpi eq, %arg1, %c0_i32_26 : i32
    %34 = arith.extui %33 : i1 to i32
    %c0_i32_27 = arith.constant 0 : i32
    %35 = arith.cmpi ne, %34, %c0_i32_27 : i32
    scf.if %35 {
      %c0_28 = arith.constant 0 : index
      %c0_29 = arith.constant 0 : index
      %36 = vector.load %arg7[%c0_28, %c0_29] : memref<8x16xf32, #tpu.memory_space<vmem>>, vector<8x16xf32>
      %37 = vector.shape_cast %36 : vector<8x16xf32> to vector<1x8x16xf32>
      %cst_30 = arith.constant dense<0.000000e+00> : vector<1xf32>
      %38 = vector.multi_reduction <add>, %37, %cst_30 [1, 2] : vector<1x8x16xf32> to vector<1xf32>
      %39 = vector.shape_cast %38 : vector<1xf32> to vector<1x1x1xf32>
      %40 = vector.extract %39[0, 0, 0] : f32 from vector<1x1x1xf32>
      %41 = vector.broadcast %40 : f32 to vector<1x1x1xf32>
      %c0_31 = arith.constant 0 : index
      %c0_32 = arith.constant 0 : index
      %c0_33 = arith.constant 0 : index
      %42 = vector.load %arg4[%c0_31, %c0_32, %c0_33] : memref<1x1x1xf32, #tpu.memory_space<vmem>>, vector<1x1x1xf32>
      tpu.vector_store %arg4[%c0_31, %c0_32, %c0_33], %41 {strides = array<i32>} : memref<1x1x1xf32, #tpu.memory_space<vmem>>, vector<1x1x1xf32>,
      %c0_34 = arith.constant 0 : index
      %c0_35 = arith.constant 0 : index
      %43 = vector.load %arg8[%c0_34, %c0_35] : memref<8x16xf32, #tpu.memory_space<vmem>>, vector<8x16xf32>
      %44 = vector.shape_cast %43 : vector<8x16xf32> to vector<1x8x16xf32>
      %cst_36 = arith.constant dense<0.000000e+00> : vector<1xf32>
      %45 = vector.multi_reduction <add>, %44, %cst_36 [1, 2] : vector<1x8x16xf32> to vector<1xf32>
      %46 = vector.shape_cast %45 : vector<1xf32> to vector<1x1x1xf32>
      %47 = vector.extract %46[0, 0, 0] : f32 from vector<1x1x1xf32>
      %c0_37 = arith.constant 0 : index
      %c0_38 = arith.constant 0 : index
      %48 = vector.load %arg10[%c0_37, %c0_38] : memref<1x16xf32, #tpu.memory_space<vmem>>, vector<1x16xf32>
      %49 = vector.shape_cast %48 : vector<1x16xf32> to vector<1x1x16xf32>
      %cst_39 = arith.constant dense<0.000000e+00> : vector<1xf32>
      %50 = vector.multi_reduction <add>, %49, %cst_39 [1, 2] : vector<1x1x16xf32> to vector<1xf32>
      %51 = vector.shape_cast %50 : vector<1xf32> to vector<1x1x1xf32>
      %52 = vector.extract %51[0, 0, 0] : f32 from vector<1x1x1xf32>
      %53 = arith.subf %47, %52 : f32
      %54 = vector.broadcast %53 : f32 to vector<1x1x1xf32>
      %c0_40 = arith.constant 0 : index
      %c0_41 = arith.constant 0 : index
      %c0_42 = arith.constant 0 : index
      %55 = vector.load %arg5[%c0_40, %c0_41, %c0_42] : memref<1x1x1xf32, #tpu.memory_space<vmem>>, vector<1x1x1xf32>
      tpu.vector_store %arg5[%c0_40, %c0_41, %c0_42], %54 {strides = array<i32>} : memref<1x1x1xf32, #tpu.memory_space<vmem>>, vector<1x1x1xf32>,
      %c0_43 = arith.constant 0 : index
      %c0_44 = arith.constant 0 : index
      %56 = vector.load %arg9[%c0_43, %c0_44] : memref<8x16xf32, #tpu.memory_space<vmem>>, vector<8x16xf32>
      %57 = vector.shape_cast %56 : vector<8x16xf32> to vector<1x8x16xf32>
      %cst_45 = arith.constant dense<0.000000e+00> : vector<1xf32>
      %58 = vector.multi_reduction <add>, %57, %cst_45 [1, 2] : vector<1x8x16xf32> to vector<1xf32>
      %59 = vector.shape_cast %58 : vector<1xf32> to vector<1x1x1xf32>
      %60 = vector.extract %59[0, 0, 0] : f32 from vector<1x1x1xf32>
      %61 = vector.extract_strided_slice %56 {offsets = [0, 15], sizes = [8, 1], strides = [1, 1]} : vector<8x16xf32> to vector<8x1xf32>
      %62 = vector.shape_cast %61 : vector<8x1xf32> to vector<1x8x1xf32>
      %cst_46 = arith.constant dense<0.000000e+00> : vector<1xf32>
      %63 = vector.multi_reduction <add>, %62, %cst_46 [1, 2] : vector<1x8x1xf32> to vector<1xf32>
      %64 = vector.shape_cast %63 : vector<1xf32> to vector<1x1x1xf32>
      %65 = vector.extract %64[0, 0, 0] : f32 from vector<1x1x1xf32>
      %66 = arith.subf %60, %65 : f32
      %67 = vector.broadcast %66 : f32 to vector<1x1x1xf32>
      %c0_47 = arith.constant 0 : index
      %c0_48 = arith.constant 0 : index
      %c0_49 = arith.constant 0 : index
      %68 = vector.load %arg6[%c0_47, %c0_48, %c0_49] : memref<1x1x1xf32, #tpu.memory_space<vmem>>, vector<1x1x1xf32>
      tpu.vector_store %arg6[%c0_47, %c0_48, %c0_49], %67 {strides = array<i32>} : memref<1x1x1xf32, #tpu.memory_space<vmem>>, vector<1x1x1xf32>,
    } else {
    }
    return
  }
  func.func @transform_0(%arg0: i32, %arg1: i32) -> (i32, i32, i32) {
    %c1_i32 = arith.constant 1 : i32
    %0 = arith.muli %arg0, %c1_i32 : i32
    %1 = arith.addi %0, %arg1 : i32
    %c0_i32 = arith.constant 0 : i32
    %c0_i32_0 = arith.constant 0 : i32
    %c0_i32_1 = arith.constant 0 : i32
    return %1, %c0_i32, %c0_i32_0 : i32, i32, i32
  }
  func.func @transform_1(%arg0: i32, %arg1: i32) -> (i32, i32, i32) {
    %c1_i32 = arith.constant 1 : i32
    %0 = arith.muli %arg0, %c1_i32 : i32
    %1 = arith.addi %0, %arg1 : i32
    %c0_i32 = arith.constant 0 : i32
    %c0_i32_0 = arith.constant 0 : i32
    %c0_i32_1 = arith.constant 0 : i32
    return %1, %c0_i32, %c0_i32_0 : i32, i32, i32
  }
  func.func @transform_2(%arg0: i32, %arg1: i32) -> (i32, i32, i32) {
    %c0_i32 = arith.constant 0 : i32
    %c0_i32_0 = arith.constant 0 : i32
    %c0_i32_1 = arith.constant 0 : i32
    return %arg0, %c0_i32, %c0_i32_0 : i32, i32, i32
  }
  func.func @transform_3(%arg0: i32, %arg1: i32) -> (i32, i32, i32) {
    %c0_i32 = arith.constant 0 : i32
    %c0_i32_0 = arith.constant 0 : i32
    %c0_i32_1 = arith.constant 0 : i32
    return %arg0, %c0_i32, %c0_i32_0 : i32, i32, i32
  }
  func.func @transform_4(%arg0: i32, %arg1: i32) -> (i32, i32, i32) {
    %c0_i32 = arith.constant 0 : i32
    %c0_i32_0 = arith.constant 0 : i32
    %c0_i32_1 = arith.constant 0 : i32
    return %arg0, %c0_i32, %c0_i32_0 : i32, i32, i32
  }
}

</mosaic_0001>

<llo_original>
// kernel: tpu_custom_call.1
$region0: #{tpu_custom_call.1}
  #allocation0 [shape = 'u32[]', space=smem, size = 0x4, offset = 0x4, fixed_abs, tag = 'smem constant byte address 0x4 - core index']
  #allocation1 [shape = 'u32[144,128]{1,0:T(1,128)}', space=vmem, size = 0x12000, scoped, tag = 'internal scratch']
  #allocation2 [shape = 'f32[8,16]{1,0:T(8,128)}', space=vmem, size = 0x1000, scoped, tag = 'scratch operand']
  #allocation3 [shape = 'f32[8,16]{1,0:T(8,128)}', space=vmem, size = 0x1000, scoped, tag = 'scratch operand']
  #allocation4 [shape = 'f32[8,16]{1,0:T(8,128)}', space=vmem, size = 0x1000, scoped, tag = 'scratch operand']
  #allocation5 [shape = 'f32[1,16]{1,0:T(1,128)}', space=vmem, size = 0x200, scoped, tag = 'scratch operand']
  %s0 = inlined_call_operand.hbm [shape: f32[8,16,16], index: 0, kind: input, shape index: {}]
  %s1 = inlined_call_operand.hbm [shape: f32[8,16,16], index: 1, kind: input, shape index: {}]
  %s2 = inlined_call_operand.hbm [shape: f32[1,1,1], index: 2, kind: output, shape index: {0}]
  %s3 = inlined_call_operand.hbm [shape: f32[1,1,1], index: 3, kind: output, shape index: {1}]
  %s4 = inlined_call_operand.hbm [shape: f32[1,1,1], index: 4, kind: output, shape index: {2}]
  %5 = xla_tuple %s2, %s3, %s4
  %s6 = sld [smem:[#allocation0]]
  $region50: #{tpu_custom_call.1} parent=0
    _
  %s8 = ssub.s32 1, %s6
  %s9 = scalar_select 0, %s8, %s6
  $region1: #{tpu_custom_call.1} parent=0
    #allocation6 [shape = 'u8[65536]{0}', space=vmem, size = 0x10000, scoped, tag = 'input window, operand 0, single buffered']
    #allocation7 [shape = 's32[1]{0}', space=sflag, size = 0x4, scoped, tag = 'scoped memory for tpu_custom_call.1']
    #allocation8 [shape = 's32[1]{0}', space=sflag, size = 0x4, scoped, tag = 'scoped memory for tpu_custom_call.1']
    #allocation9 [shape = 'u8[65536]{0}', space=vmem, size = 0x10000, scoped, tag = 'input window, operand 1, single buffered']
    #allocation10 [shape = 's32[1]{0}', space=sflag, size = 0x4, scoped, tag = 'scoped memory for tpu_custom_call.1']
    #allocation11 [shape = 'u8[512]{0}', space=vmem, size = 0x400, scoped, tag = 'output window, operand 0, single buffered']
    #allocation12 [shape = 'u8[512]{0}', space=vmem, size = 0x400, scoped, tag = 'output window, operand 1, single buffered']
    #allocation13 [shape = 's32[1]{0}', space=sflag, size = 0x4, scoped, tag = 'scoped memory for tpu_custom_call.1']
    #allocation14 [shape = 'u8[512]{0}', space=vmem, size = 0x400, scoped, tag = 'output window, operand 2, single buffered']
    %10 = vsyncpa [#allocation7], 0
    %11 = vsyncpa [#allocation10], 0
    %12 = vsyncpa [#allocation8], 0
    %13 = vsyncpa [#allocation13], 0
    // Predicated region
    $region2: #{tpu_custom_call.1} parent=1 // pred_check
      _
    $region3: #{tpu_custom_call.1} parent=1 // pred_check_branch
      %15 = sbr.rel (0) target = $region5
    $region4: #{tpu_custom_call.1} parent=1 // pred_region
      %s16 = sadd.s32 0, 0
      %s17 = smul.u32 8, %s16
      %s19 = ssub.s32 2048, 2048
      %20 = vsyncadd [#allocation7], %s19
      %s21 = smul.addr %s17, 2
      %s22 = smul.addr %s21, 128
      %s23 = scalar_lea.hbm %s0, %s22
      %s24 = sshll.u32 [#allocation6], 4
      %s25 = int_to_ptr.vmem [resolvable:$true] %s24
      %30 = dma.hbm_to_vmem [thread:$0]  %s23, 2048, %s25, [#allocation7], 128, 128, 8
    $region5: #{tpu_custom_call.1} parent=1 // pred_fallthru
      _
    // Predicated region
    $region6: #{tpu_custom_call.1} parent=1 // pred_check
      _
    $region7: #{tpu_custom_call.1} parent=1 // pred_check_branch
      %32 = sbr.rel (0) target = $region9
    $region8: #{tpu_custom_call.1} parent=1 // pred_region
      %s33 = sadd.s32 0, 0
      %s34 = smul.u32 8, %s33
      %s36 = ssub.s32 2048, 2048
      %37 = vsyncadd [#allocation10], %s36
      %s38 = smul.addr %s34, 2
      %s39 = smul.addr %s38, 128
      %s40 = scalar_lea.hbm %s1, %s39
      %s41 = sshll.u32 [#allocation9], 4
      %s42 = int_to_ptr.vmem [resolvable:$true] %s41
      %47 = dma.hbm_to_vmem [thread:$0]  %s40, 2048, %s42, [#allocation10], 128, 128, 8
    $region9: #{tpu_custom_call.1} parent=1 // pred_fallthru
      _
    // Predicated region
    $region10: #{tpu_custom_call.1} parent=1 // pred_check
      _
    $region11: #{tpu_custom_call.1} parent=1 // pred_check_branch
      %49 = sbr.rel (0) target = $region13
    $region12: #{tpu_custom_call.1} parent=1 // pred_region
      %50 = dma.done [#allocation7], 2048
    $region13: #{tpu_custom_call.1} parent=1 // pred_fallthru
      _
    // Predicated region
    $region14: #{tpu_custom_call.1} parent=1 // pred_check
      _
    $region15: #{tpu_custom_call.1} parent=1 // pred_check_branch
      %52 = sbr.rel (0) target = $region17
    $region16: #{tpu_custom_call.1} parent=1 // pred_region
      %53 = dma.done [#allocation10], 2048
    $region17: #{tpu_custom_call.1} parent=1 // pred_fallthru
      _
    %s54 = sadd.s32 0, 0
    %s55 = smul.u32 8, %s54
    %s56 = sadd.s32 0, 0
    %s57 = smul.u32 8, %s56
    %p58 = scmp.eq.s32.totalorder 0, 0
    // Predicated region
    $region18: #{tpu_custom_call.1} parent=1 // pred_check
      %p59 = pneg %p58
    $region19: #{tpu_custom_call.1} parent=1 // pred_check_branch
      %61 = sbr.rel (%p59) target = $region21
    $region20: #{tpu_custom_call.1} parent=1 // pred_region
      %vm62 = vcmask 130048
      %63 = vst.msk [vmem:[#allocation2] sm:$0xff] %vm62, 0.0
      %64 = vst.msk [vmem:[#allocation3] sm:$0xff] %vm62, 0.0
      %65 = vst.msk [vmem:[#allocation4] sm:$0xff] %vm62, 0.0
      %vm66 = vcmask 122880
      %67 = vst.msk [vmem:[#allocation5] sm:$0x1] %vm66, 0.0
    $region21: #{tpu_custom_call.1} parent=1 // pred_fallthru
      _
    %v68 = vld [vmem:[#allocation6] sm:$0xff]
    %v69 = vld [vmem:[#allocation6 + $0x8] sm:$0xff]
    %v70 = vld [vmem:[#allocation6 + $0x10] sm:$0xff]
    %v71 = vld [vmem:[#allocation6 + $0x18] sm:$0xff]
    %v72 = vld [vmem:[#allocation6 + $0x20] sm:$0xff]
    %v73 = vld [vmem:[#allocation6 + $0x28] sm:$0xff]
    %v74 = vld [vmem:[#allocation6 + $0x30] sm:$0xff]
    %v75 = vld [vmem:[#allocation6 + $0x38] sm:$0xff]
    %v76 = vld [vmem:[#allocation6 + $0x40] sm:$0xff]
    %v77 = vld [vmem:[#allocation6 + $0x48] sm:$0xff]
    %v78 = vld [vmem:[#allocation6 + $0x50] sm:$0xff]
    %v79 = vld [vmem:[#allocation6 + $0x58] sm:$0xff]
    %v80 = vld [vmem:[#allocation6 + $0x60] sm:$0xff]
    %v81 = vld [vmem:[#allocation6 + $0x68] sm:$0xff]
    %v82 = vld [vmem:[#allocation6 + $0x70] sm:$0xff]
    %v83 = vld [vmem:[#allocation6 + $0x78] sm:$0xff]
    %v84 = vld [vmem:[#allocation9] sm:$0xff]
    %v85 = vld [vmem:[#allocation9 + $0x8] sm:$0xff]
    %v86 = vld [vmem:[#allocation9 + $0x10] sm:$0xff]
    %v87 = vld [vmem:[#allocation9 + $0x18] sm:$0xff]
    %v88 = vld [vmem:[#allocation9 + $0x20] sm:$0xff]
    %v89 = vld [vmem:[#allocation9 + $0x28] sm:$0xff]
    %v90 = vld [vmem:[#allocation9 + $0x30] sm:$0xff]
    %v91 = vld [vmem:[#allocation9 + $0x38] sm:$0xff]
    %v92 = vld [vmem:[#allocation9 + $0x40] sm:$0xff]
    %v93 = vld [vmem:[#allocation9 + $0x48] sm:$0xff]
    %v94 = vld [vmem:[#allocation9 + $0x50] sm:$0xff]
    %v95 = vld [vmem:[#allocation9 + $0x58] sm:$0xff]
    %v96 = vld [vmem:[#allocation9 + $0x60] sm:$0xff]
    %v97 = vld [vmem:[#allocation9 + $0x68] sm:$0xff]
    %v98 = vld [vmem:[#allocation9 + $0x70] sm:$0xff]
    %v99 = vld [vmem:[#allocation9 + $0x78] sm:$0xff]
    %v100 = vsub.f32 %v68, %v84
    %v101 = vsub.f32 %v69, %v85
    %v102 = vsub.f32 %v70, %v86
    %v103 = vsub.f32 %v71, %v87
    %v104 = vsub.f32 %v72, %v88
    %v105 = vsub.f32 %v73, %v89
    %v106 = vsub.f32 %v74, %v90
    %v107 = vsub.f32 %v75, %v91
    %v108 = vsub.f32 %v76, %v92
    %v109 = vsub.f32 %v77, %v93
    %v110 = vsub.f32 %v78, %v94
    %v111 = vsub.f32 %v79, %v95
    %v112 = vsub.f32 %v80, %v96
    %v113 = vsub.f32 %v81, %v97
    %v114 = vsub.f32 %v82, %v98
    %v115 = vsub.f32 %v83, %v99
    %v116 = vld [vmem:[#allocation2] sm:$0xff]
    %v117 = vmul.f32 %v100, %v100
    %v118 = vmul.f32 %v101, %v101
    %v119 = vmul.f32 %v102, %v102
    %v120 = vmul.f32 %v103, %v103
    %v121 = vmul.f32 %v104, %v104
    %v122 = vmul.f32 %v105, %v105
    %v123 = vmul.f32 %v106, %v106
    %v124 = vmul.f32 %v107, %v107
    %v125 = vmul.f32 %v108, %v108
    %v126 = vmul.f32 %v109, %v109
    %v127 = vmul.f32 %v110, %v110
    %v128 = vmul.f32 %v111, %v111
    %v129 = vmul.f32 %v112, %v112
    %v130 = vmul.f32 %v113, %v113
    %v131 = vmul.f32 %v114, %v114
    %v132 = vmul.f32 %v115, %v115
    %vm133 = vcmask 130048
    %v134 = vsel %vm133, %v117, 0.0
    %v135 = vsel %vm133, %v118, 0.0
    %v136 = vadd.f32 %v134, %v135
    %v137 = vsel %vm133, %v119, 0.0
    %v138 = vadd.f32 %v136, %v137
    %v139 = vsel %vm133, %v120, 0.0
    %v140 = vadd.f32 %v138, %v139
    %v141 = vsel %vm133, %v121, 0.0
    %v142 = vadd.f32 %v140, %v141
    %v143 = vsel %vm133, %v122, 0.0
    %v144 = vadd.f32 %v142, %v143
    %v145 = vsel %vm133, %v123, 0.0
    %v146 = vadd.f32 %v144, %v145
    %v147 = vsel %vm133, %v124, 0.0
    %v148 = vadd.f32 %v146, %v147
    %v149 = vsel %vm133, %v125, 0.0
    %v150 = vadd.f32 %v148, %v149
    %v151 = vsel %vm133, %v126, 0.0
    %v152 = vadd.f32 %v150, %v151
    %v153 = vsel %vm133, %v127, 0.0
    %v154 = vadd.f32 %v152, %v153
    %v155 = vsel %vm133, %v128, 0.0
    %v156 = vadd.f32 %v154, %v155
    %v157 = vsel %vm133, %v129, 0.0
    %v158 = vadd.f32 %v156, %v157
    %v159 = vsel %vm133, %v130, 0.0
    %v160 = vadd.f32 %v158, %v159
    %v161 = vsel %vm133, %v131, 0.0
    %v162 = vadd.f32 %v160, %v161
    %v163 = vsel %vm133, %v132, 0.0
    %v164 = vadd.f32 %v162, %v163
    %v165 = vadd.f32 %v116, %v164
    %166 = vst.msk [vmem:[#allocation2] sm:$0xff] %vm133, %v165
    %v167 = vrot.slane %v100, 1
    %v168 = vrot.slane %v102, 1
    %v169 = vrot.slane %v104, 1
    %v170 = vrot.slane %v106, 1
    %v171 = vrot.slane %v108, 1
    %v172 = vrot.slane %v110, 1
    %v173 = vrot.slane %v112, 1
    %v174 = vrot.slane %v114, 1
    %v175 = vrot.slane %v101, 1
    %v176 = vrot.slane %v103, 1
    %v177 = vrot.slane %v105, 1
    %v178 = vrot.slane %v107, 1
    %v179 = vrot.slane %v109, 1
    %v180 = vrot.slane %v111, 1
    %v181 = vrot.slane %v113, 1
    %v182 = vrot.slane %v115, 1
    %v183 = vlaneseq
    %v184 = vshrl.u32 %v183, 7
    %vm185 = vcmp.lt.s32.totalorder %v184, 7
    %v186 = vsel %vm185, %v167, %v175
    %v187 = vsel %vm185, %v168, %v176
    %v188 = vsel %vm185, %v169, %v177
    %v189 = vsel %vm185, %v170, %v178
    %v190 = vsel %vm185, %v171, %v179
    %v191 = vsel %vm185, %v172, %v180
    %v192 = vsel %vm185, %v173, %v181
    %v193 = vsel %vm185, %v174, %v182
    %v194 = vsel %vm185, %v175, %v167
    %v195 = vsel %vm185, %v176, %v168
    %v196 = vsel %vm185, %v177, %v169
    %v197 = vsel %vm185, %v178, %v170
    %v198 = vsel %vm185, %v179, %v171
    %v199 = vsel %vm185, %v180, %v172
    %v200 = vsel %vm185, %v181, %v173
    %v201 = vsel %vm185, %v182, %v174
    %v202 = vsub.f32 %v186, %v100
    %v203 = vsub.f32 %v194, %v101
    %v204 = vsub.f32 %v187, %v102
    %v205 = vsub.f32 %v195, %v103
    %v206 = vsub.f32 %v188, %v104
    %v207 = vsub.f32 %v196, %v105
    %v208 = vsub.f32 %v189, %v106
    %v209 = vsub.f32 %v197, %v107
    %v210 = vsub.f32 %v190, %v108
    %v211 = vsub.f32 %v198, %v109
    %v212 = vsub.f32 %v191, %v110
    %v213 = vsub.f32 %v199, %v111
    %v214 = vsub.f32 %v192, %v112
    %v215 = vsub.f32 %v200, %v113
    %v216 = vsub.f32 %v193, %v114
    %v217 = vsub.f32 %v201, %v115
    %v218 = vand.u32 2147483647, %v202
    %v219 = vand.u32 2147483647, %v203
    %v220 = vand.u32 2147483647, %v204
    %v221 = vand.u32 2147483647, %v205
    %v222 = vand.u32 2147483647, %v206
    %v223 = vand.u32 2147483647, %v207
    %v224 = vand.u32 2147483647, %v208
    %v225 = vand.u32 2147483647, %v209
    %v226 = vand.u32 2147483647, %v210
    %v227 = vand.u32 2147483647, %v211
    %v228 = vand.u32 2147483647, %v212
    %v229 = vand.u32 2147483647, %v213
    %v230 = vand.u32 2147483647, %v214
    %v231 = vand.u32 2147483647, %v215
    %v232 = vand.u32 2147483647, %v216
    %v233 = vand.u32 2147483647, %v217
    %v234 = vld [vmem:[#allocation3] sm:$0xff]
    %v235 = vsel %vm133, %v218, 0.0
    %v236 = vsel %vm133, %v219, 0.0
    %v237 = vadd.f32 %v235, %v236
    %v238 = vsel %vm133, %v220, 0.0
    %v239 = vadd.f32 %v237, %v238
    %v240 = vsel %vm133, %v221, 0.0
    %v241 = vadd.f32 %v239, %v240
    %v242 = vsel %vm133, %v222, 0.0
    %v243 = vadd.f32 %v241, %v242
    %v244 = vsel %vm133, %v223, 0.0
    %v245 = vadd.f32 %v243, %v244
    %v246 = vsel %vm133, %v224, 0.0
    %v247 = vadd.f32 %v245, %v246
    %v248 = vsel %vm133, %v225, 0.0
    %v249 = vadd.f32 %v247, %v248
    %v250 = vsel %vm133, %v226, 0.0
    %v251 = vadd.f32 %v249, %v250
    %v252 = vsel %vm133, %v227, 0.0
    %v253 = vadd.f32 %v251, %v252
    %v254 = vsel %vm133, %v228, 0.0
    %v255 = vadd.f32 %v253, %v254
    %v256 = vsel %vm133, %v229, 0.0
    %v257 = vadd.f32 %v255, %v256
    %v258 = vsel %vm133, %v230, 0.0
    %v259 = vadd.f32 %v257, %v258
    %v260 = vsel %vm133, %v231, 0.0
    %v261 = vadd.f32 %v259, %v260
    %v262 = vsel %vm133, %v232, 0.0
    %v263 = vadd.f32 %v261, %v262
    %v264 = vsel %vm133, %v233, 0.0
    %v265 = vadd.f32 %v263, %v264
    %v266 = vadd.f32 %v234, %v265
    %267 = vst.msk [vmem:[#allocation3] sm:$0xff] %vm133, %v266
    %v268 = vld [vmem:[#allocation5] sm:$0x1]
    %vm269 = vcmask 130055
    %v270 = vsel %vm269, %v219, 0.0
    %v271 = vsel %vm269, %v221, 0.0
    %v272 = vadd.f32 %v270, %v271
    %v273 = vsel %vm269, %v223, 0.0
    %v274 = vadd.f32 %v272, %v273
    %v275 = vsel %vm269, %v225, 0.0
    %v276 = vadd.f32 %v274, %v275
    %v277 = vsel %vm269, %v227, 0.0
    %v278 = vadd.f32 %v276, %v277
    %v279 = vsel %vm269, %v229, 0.0
    %v280 = vadd.f32 %v278, %v279
    %v281 = vsel %vm269, %v231, 0.0
    %v282 = vadd.f32 %v280, %v281
    %v283 = vsel %vm269, %v233, 0.0
    %v284 = vadd.f32 %v282, %v283
    %v286 = vcombine.high %v284, %v284
    %v288 = vunpack.c.l.s4 1966171168
    %v289 = vunpack.c.0.s8 %v288
    %v290 = vlaneseq
    %v291 = vshrl.u32 %v290, 7
    %v292 = vsub.s32 %v289, %v291
    %v293 = vrot.slane %v286, %v292
    %v294 = vcombine.high %v293, %v293
    %v296 = vunpack.c.l.s4 1966171168
    %v297 = vunpack.c.0.s8 %v296
    %v298 = vlaneseq
    %v299 = vshrl.u32 %v298, 7
    %v300 = vsub.s32 %v297, %v299
    %v301 = vrot.slane %v294, %v300
    %v302 = vcombine.high %v301, %v301
    %v304 = vadd.f32 %v268, %v302
    %vm305 = vcmask 122880
    %306 = vst.msk [vmem:[#allocation5] sm:$0x1] %vm305, %v304
    %vm307 = vcmask 1047680
    %308 = vrot.lane.b32.xlu0 %v100, 16
    %v309 = vpop.permute.xlu0 %308
    %v310 = vsel %vm307, %v309, %v100
    %311 = vrot.lane.b32.xlu0 %v101, 16
    %v312 = vpop.permute.xlu0 %311
    %v313 = vsel %vm307, %v312, %v101
    %314 = vrot.lane.b32.xlu0 %v102, 16
    %v315 = vpop.permute.xlu0 %314
    %v316 = vsel %vm307, %v315, %v102
    %317 = vrot.lane.b32.xlu0 %v103, 16
    %v318 = vpop.permute.xlu0 %317
    %v319 = vsel %vm307, %v318, %v103
    %320 = vrot.lane.b32.xlu0 %v104, 16
    %v321 = vpop.permute.xlu0 %320
    %v322 = vsel %vm307, %v321, %v104
    %323 = vrot.lane.b32.xlu0 %v105, 16
    %v324 = vpop.permute.xlu0 %323
    %v325 = vsel %vm307, %v324, %v105
    %326 = vrot.lane.b32.xlu0 %v106, 16
    %v327 = vpop.permute.xlu0 %326
    %v328 = vsel %vm307, %v327, %v106
    %329 = vrot.lane.b32.xlu0 %v107, 16
    %v330 = vpop.permute.xlu0 %329
    %v331 = vsel %vm307, %v330, %v107
    %332 = vrot.lane.b32.xlu0 %v108, 16
    %v333 = vpop.permute.xlu0 %332
    %v334 = vsel %vm307, %v333, %v108
    %335 = vrot.lane.b32.xlu0 %v109, 16
    %v336 = vpop.permute.xlu0 %335
    %v337 = vsel %vm307, %v336, %v109
    %338 = vrot.lane.b32.xlu0 %v110, 16
    %v339 = vpop.permute.xlu0 %338
    %v340 = vsel %vm307, %v339, %v110
    %341 = vrot.lane.b32.xlu0 %v111, 16
    %v342 = vpop.permute.xlu0 %341
    %v343 = vsel %vm307, %v342, %v111
    %344 = vrot.lane.b32.xlu0 %v112, 16
    %v345 = vpop.permute.xlu0 %344
    %v346 = vsel %vm307, %v345, %v112
    %347 = vrot.lane.b32.xlu0 %v113, 16
    %v348 = vpop.permute.xlu0 %347
    %v349 = vsel %vm307, %v348, %v113
    %350 = vrot.lane.b32.xlu0 %v114, 16
    %v351 = vpop.permute.xlu0 %350
    %v352 = vsel %vm307, %v351, %v114
    %353 = vrot.lane.b32.xlu0 %v115, 16
    %v354 = vpop.permute.xlu0 %353
    %v355 = vsel %vm307, %v354, %v115
    %356 = vrot.lane.b32.xlu0 %v310, 16
    %v357 = vpop.permute.xlu0 %356
    %358 = vrot.lane.b32.xlu0 %v313, 16
    %v359 = vpop.permute.xlu0 %358
    %360 = vrot.lane.b32.xlu0 %v316, 16
    %v361 = vpop.permute.xlu0 %360
    %362 = vrot.lane.b32.xlu0 %v319, 16
    %v363 = vpop.permute.xlu0 %362
    %364 = vrot.lane.b32.xlu0 %v322, 16
    %v365 = vpop.permute.xlu0 %364
    %366 = vrot.lane.b32.xlu0 %v325, 16
    %v367 = vpop.permute.xlu0 %366
    %368 = vrot.lane.b32.xlu0 %v328, 16
    %v369 = vpop.permute.xlu0 %368
    %370 = vrot.lane.b32.xlu0 %v331, 16
    %v371 = vpop.permute.xlu0 %370
    %372 = vrot.lane.b32.xlu0 %v334, 16
    %v373 = vpop.permute.xlu0 %372
    %374 = vrot.lane.b32.xlu0 %v337, 16
    %v375 = vpop.permute.xlu0 %374
    %376 = vrot.lane.b32.xlu0 %v340, 16
    %v377 = vpop.permute.xlu0 %376
    %378 = vrot.lane.b32.xlu0 %v343, 16
    %v379 = vpop.permute.xlu0 %378
    %380 = vrot.lane.b32.xlu0 %v346, 16
    %v381 = vpop.permute.xlu0 %380
    %382 = vrot.lane.b32.xlu0 %v349, 16
    %v383 = vpop.permute.xlu0 %382
    %384 = vrot.lane.b32.xlu0 %v352, 16
    %v385 = vpop.permute.xlu0 %384
    %386 = vrot.lane.b32.xlu0 %v355, 16
    %v387 = vpop.permute.xlu0 %386
    %v388 = vsel %vm307, %v357, %v100
    %v389 = vsel %vm307, %v359, %v101
    %v390 = vsel %vm307, %v361, %v102
    %v391 = vsel %vm307, %v363, %v103
    %v392 = vsel %vm307, %v365, %v104
    %v393 = vsel %vm307, %v367, %v105
    %v394 = vsel %vm307, %v369, %v106
    %v395 = vsel %vm307, %v371, %v107
    %v396 = vsel %vm307, %v373, %v108
    %v397 = vsel %vm307, %v375, %v109
    %v398 = vsel %vm307, %v377, %v110
    %v399 = vsel %vm307, %v379, %v111
    %v400 = vsel %vm307, %v381, %v112
    %v401 = vsel %vm307, %v383, %v113
    %v402 = vsel %vm307, %v385, %v114
    %v403 = vsel %vm307, %v387, %v115
    %420 = vrot.lane.b32.xlu0 %v100, 1
    %v421 = vpop.permute.xlu0 %420
    %422 = vrot.lane.b32.xlu0 %v101, 1
    %v423 = vpop.permute.xlu0 %422
    %424 = vrot.lane.b32.xlu0 %v102, 1
    %v425 = vpop.permute.xlu0 %424
    %426 = vrot.lane.b32.xlu0 %v103, 1
    %v427 = vpop.permute.xlu0 %426
    %428 = vrot.lane.b32.xlu0 %v104, 1
    %v429 = vpop.permute.xlu0 %428
    %430 = vrot.lane.b32.xlu0 %v105, 1
    %v431 = vpop.permute.xlu0 %430
    %432 = vrot.lane.b32.xlu0 %v106, 1
    %v433 = vpop.permute.xlu0 %432
    %434 = vrot.lane.b32.xlu0 %v107, 1
    %v435 = vpop.permute.xlu0 %434
    %436 = vrot.lane.b32.xlu0 %v108, 1
    %v437 = vpop.permute.xlu0 %436
    %438 = vrot.lane.b32.xlu0 %v109, 1
    %v439 = vpop.permute.xlu0 %438
    %440 = vrot.lane.b32.xlu0 %v110, 1
    %v441 = vpop.permute.xlu0 %440
    %442 = vrot.lane.b32.xlu0 %v111, 1
    %v443 = vpop.permute.xlu0 %442
    %444 = vrot.lane.b32.xlu0 %v112, 1
    %v445 = vpop.permute.xlu0 %444
    %446 = vrot.lane.b32.xlu0 %v113, 1
    %v447 = vpop.permute.xlu0 %446
    %448 = vrot.lane.b32.xlu0 %v114, 1
    %v449 = vpop.permute.xlu0 %448
    %450 = vrot.lane.b32.xlu0 %v115, 1
    %v451 = vpop.permute.xlu0 %450
    %v468 = vsub.f32 %v388, %v421
    %v469 = vsub.f32 %v389, %v423
    %v470 = vsub.f32 %v390, %v425
    %v471 = vsub.f32 %v391, %v427
    %v472 = vsub.f32 %v392, %v429
    %v473 = vsub.f32 %v393, %v431
    %v474 = vsub.f32 %v394, %v433
    %v475 = vsub.f32 %v395, %v435
    %v476 = vsub.f32 %v396, %v437
    %v477 = vsub.f32 %v397, %v439
    %v478 = vsub.f32 %v398, %v441
    %v479 = vsub.f32 %v399, %v443
    %v480 = vsub.f32 %v400, %v445
    %v481 = vsub.f32 %v401, %v447
    %v482 = vsub.f32 %v402, %v449
    %v483 = vsub.f32 %v403, %v451
    %v484 = vand.u32 2147483647, %v468
    %v485 = vand.u32 2147483647, %v469
    %v486 = vand.u32 2147483647, %v470
    %v487 = vand.u32 2147483647, %v471
    %v488 = vand.u32 2147483647, %v472
    %v489 = vand.u32 2147483647, %v473
    %v490 = vand.u32 2147483647, %v474
    %v491 = vand.u32 2147483647, %v475
    %v492 = vand.u32 2147483647, %v476
    %v493 = vand.u32 2147483647, %v477
    %v494 = vand.u32 2147483647, %v478
    %v495 = vand.u32 2147483647, %v479
    %v496 = vand.u32 2147483647, %v480
    %v497 = vand.u32 2147483647, %v481
    %v498 = vand.u32 2147483647, %v482
    %v499 = vand.u32 2147483647, %v483
    %v500 = vld [vmem:[#allocation4] sm:$0xff]
    %vm501 = vcmask 138248
    %v502 = vsel %vm501, %v484, 0.0
    %v503 = vsel %vm501, %v485, 0.0
    %v504 = vadd.f32 %v502, %v503
    %v505 = vsel %vm501, %v486, 0.0
    %v506 = vadd.f32 %v504, %v505
    %v507 = vsel %vm501, %v487, 0.0
    %v508 = vadd.f32 %v506, %v507
    %v509 = vsel %vm501, %v488, 0.0
    %v510 = vadd.f32 %v508, %v509
    %v511 = vsel %vm501, %v489, 0.0
    %v512 = vadd.f32 %v510, %v511
    %v513 = vsel %vm501, %v490, 0.0
    %v514 = vadd.f32 %v512, %v513
    %v515 = vsel %vm501, %v491, 0.0
    %v516 = vadd.f32 %v514, %v515
    %v517 = vsel %vm501, %v492, 0.0
    %v518 = vadd.f32 %v516, %v517
    %v519 = vsel %vm501, %v493, 0.0
    %v520 = vadd.f32 %v518, %v519
    %v521 = vsel %vm501, %v494, 0.0
    %v522 = vadd.f32 %v520, %v521
    %v523 = vsel %vm501, %v495, 0.0
    %v524 = vadd.f32 %v522, %v523
    %v525 = vsel %vm501, %v496, 0.0
    %v526 = vadd.f32 %v524, %v525
    %v527 = vsel %vm501, %v497, 0.0
    %v528 = vadd.f32 %v526, %v527
    %v529 = vsel %vm501, %v498, 0.0
    %v530 = vadd.f32 %v528, %v529
    %v531 = vsel %vm501, %v499, 0.0
    %v532 = vadd.f32 %v530, %v531
    %534 = vrot.lane.b32.xlu0 %v532, 127
    %v535 = vpop.permute.xlu0 %534
    %v537 = vadd.f32 %v500, %v535
    %538 = vst.msk [vmem:[#allocation4] sm:$0xff] %vm133, %v537
    // Predicated region
    $region22: #{tpu_custom_call.1} parent=1 // pred_check
      %p539 = pneg %p58
    $region23: #{tpu_custom_call.1} parent=1 // pred_check_branch
      %541 = sbr.rel (%p539) target = $region25
    $region24: #{tpu_custom_call.1} parent=1 // pred_region
      %v542 = vld [vmem:[#allocation2] sm:$0xff]
      %v543 = vsel %vm133, %v542, 0.0
      %544 = vadd.xlane.f32.xlu0 %v543
      %v545 = vpop.xlane.xlu0 %544
      %v546 = vrot.slane %v545, 4
      %v547 = vadd.f32 %v545, %v546
      %v548 = vrot.slane %v547, 2
      %v549 = vadd.f32 %v547, %v548
      %v550 = vrot.slane %v549, 1
      %v551 = vadd.f32 %v549, %v550
      %s552 = vtos %v551
      %v553 = vstv %s552
      %vm554 = vcmask 0
      %555 = vst.msk [vmem:[#allocation11] sm:$0x1] %vm554, %v553
      %v556 = vld [vmem:[#allocation3] sm:$0xff]
      %v557 = vsel %vm133, %v556, 0.0
      %558 = vadd.xlane.f32.xlu0 %v557
      %v559 = vpop.xlane.xlu0 %558
      %v560 = vrot.slane %v559, 4
      %v561 = vadd.f32 %v559, %v560
      %v562 = vrot.slane %v561, 2
      %v563 = vadd.f32 %v561, %v562
      %v564 = vrot.slane %v563, 1
      %v565 = vadd.f32 %v563, %v564
      %s566 = vtos %v565
      %v567 = vld [vmem:[#allocation5] sm:$0x1]
      %v568 = vsel %vm305, %v567, 0.0
      %569 = vadd.xlane.f32.xlu0 %v568
      %v570 = vpop.xlane.xlu0 %569
      %v571 = vrot.slane %v570, 4
      %v572 = vadd.f32 %v570, %v571
      %v573 = vrot.slane %v572, 2
      %v574 = vadd.f32 %v572, %v573
      %v575 = vrot.slane %v574, 1
      %v576 = vadd.f32 %v574, %v575
      %s577 = vtos %v576
      %s578 = ssub.f32 %s566, %s577
      %v579 = vstv %s578
      %580 = vst.msk [vmem:[#allocation12] sm:$0x1] %vm554, %v579
      %v581 = vld [vmem:[#allocation4] sm:$0xff]
      %v582 = vsel %vm133, %v581, 0.0
      %583 = vadd.xlane.f32.xlu0 %v582
      %v584 = vpop.xlane.xlu0 %583
      %v585 = vrot.slane %v584, 4
      %v586 = vadd.f32 %v584, %v585
      %v587 = vrot.slane %v586, 2
      %v588 = vadd.f32 %v586, %v587
      %v589 = vrot.slane %v588, 1
      %v590 = vadd.f32 %v588, %v589
      %s591 = vtos %v590
      %593 = vrot.lane.b32.xlu0 %v581, 113
      %v594 = vpop.permute.xlu0 %593
      %vm596 = vcmask 7168
      %v597 = vsel %vm596, %v594, 0.0
      %598 = vadd.xlane.f32.xlu0 %v597
      %v599 = vpop.xlane.xlu0 %598
      %v600 = vrot.slane %v599, 4
      %v601 = vadd.f32 %v599, %v600
      %v602 = vrot.slane %v601, 2
      %v603 = vadd.f32 %v601, %v602
      %v604 = vrot.slane %v603, 1
      %v605 = vadd.f32 %v603, %v604
      %s606 = vtos %v605
      %s607 = ssub.f32 %s591, %s606
      %v608 = vstv %s607
      %609 = vst.msk [vmem:[#allocation14] sm:$0x1] %vm554, %v608
    $region25: #{tpu_custom_call.1} parent=1 // pred_fallthru
      _
    // Predicated region
    $region26: #{tpu_custom_call.1} parent=1 // pred_check
      _
    $region27: #{tpu_custom_call.1} parent=1 // pred_check_branch
      %611 = sbr.rel (0) target = $region29
    $region28: #{tpu_custom_call.1} parent=1 // pred_region
      %s613 = ssub.s32 16, 16
      %614 = vsyncadd [#allocation8], %s613
      %s616 = sshll.u32 [#allocation11], 4
      %s617 = int_to_ptr.vmem [resolvable:$true] %s616
      %619 = dma.vmem_to_hbm [thread:$0]  %s617, 16, %s2, [#allocation8]
    $region29: #{tpu_custom_call.1} parent=1 // pred_fallthru
      _
    // Predicated region
    $region30: #{tpu_custom_call.1} parent=1 // pred_check
      _
    $region31: #{tpu_custom_call.1} parent=1 // pred_check_branch
      %621 = sbr.rel (0) target = $region33
    $region32: #{tpu_custom_call.1} parent=1 // pred_region
      %s623 = ssub.s32 16, 16
      %624 = vsyncadd [#allocation13], %s623
      %s626 = sshll.u32 [#allocation12], 4
      %s627 = int_to_ptr.vmem [resolvable:$true] %s626
      %629 = dma.vmem_to_hbm [thread:$0]  %s627, 16, %s3, [#allocation13]
    $region33: #{tpu_custom_call.1} parent=1 // pred_fallthru
      _
    // Predicated region
    $region34: #{tpu_custom_call.1} parent=1 // pred_check
      _
    $region35: #{tpu_custom_call.1} parent=1 // pred_check_branch
      %631 = sbr.rel (0) target = $region37
    $region36: #{tpu_custom_call.1} parent=1 // pred_region
      %s633 = ssub.s32 16, 16
      %634 = vsyncadd [#allocation13], %s633
      %s636 = sshll.u32 [#allocation14], 4
      %s637 = int_to_ptr.vmem [resolvable:$true] %s636
      %639 = dma.vmem_to_hbm [thread:$0]  %s637, 16, %s4, [#allocation13]
    $region37: #{tpu_custom_call.1} parent=1 // pred_fallthru
      _
    // Predicated region
    $region38: #{tpu_custom_call.1} parent=1 // pred_check
      _
    $region39: #{tpu_custom_call.1} parent=1 // pred_check_branch
      %641 = sbr.rel (0) target = $region41
    $region40: #{tpu_custom_call.1} parent=1 // pred_region
      %642 = dma.done [#allocation8], 16
    $region41: #{tpu_custom_call.1} parent=1 // pred_fallthru
      _
    // Predicated region
    $region42: #{tpu_custom_call.1} parent=1 // pred_check
      _
    $region43: #{tpu_custom_call.1} parent=1 // pred_check_branch
      %644 = sbr.rel (0) target = $region45
    $region44: #{tpu_custom_call.1} parent=1 // pred_region
      %645 = dma.done [#allocation13], 16
    $region45: #{tpu_custom_call.1} parent=1 // pred_fallthru
      _
    // Predicated region
    $region46: #{tpu_custom_call.1} parent=1 // pred_check
      _
    $region47: #{tpu_custom_call.1} parent=1 // pred_check_branch
      %647 = sbr.rel (0) target = $region49
    $region48: #{tpu_custom_call.1} parent=1 // pred_region
      %648 = dma.done [#allocation13], 16
    $region49: #{tpu_custom_call.1} parent=1 // pred_fallthru
      _
    %649 = vsyncpa [#allocation7], 1
    %650 = vsyncpa [#allocation10], 1
    %651 = vsyncpa [#allocation8], 1
    %652 = vsyncpa [#allocation13], 1

</llo_original>
